<compile_context>
chip_gen: v5e
topology: v5e:2x2
jax: 0.10.0
libtpu: 0.0.40
codegen_flags: <defaults>
</compile_context>

<pallas_src>
import functools

import jax
import jax.numpy as jnp
from jax.experimental import pallas as pl
from jax.experimental.pallas import tpu as pltpu

_VMEM_BUDGET_BYTES = 16 * 1024 * 1024  # pipeline working set; safe on v7x (64 MiB VMEM)


def _fr_kernel_split(x1_ref, x2_ref, w1_ref, w2_ref, o_ref):
    """Two half-height MXU matmuls stored into disjoint sublane row ranges."""
    c1 = w1_ref.shape[0]
    o_ref[:c1, :] = jnp.dot(
        w1_ref[...], x1_ref[...], preferred_element_type=jnp.float32
    ).astype(o_ref.dtype)
    o_ref[c1:, :] = jnp.dot(
        w2_ref[...], x2_ref[...], preferred_element_type=jnp.float32
    ).astype(o_ref.dtype)


def _fr_kernel_padded(x1_ref, x2_ref, w1_ref, w2_ref, o_ref):
    """Fallback: channel-concat folded into zero-padded full-height weights."""
    y = jnp.dot(w1_ref[...], x1_ref[...], preferred_element_type=jnp.float32)
    y = y + jnp.dot(w2_ref[...], x2_ref[...], preferred_element_type=jnp.float32)
    o_ref[...] = y.astype(o_ref.dtype)


def _pick_tile(length, cap, min_tiles=1):
    """Pick a lane-tile size (and padded extent) for a flattened spatial dim.

    Prefers (a) a full-extent single tile for small / awkward extents (no
    padding, no masked-tail handling), (b) the largest 128-multiple divisor of
    `length` that fits the VMEM-derived `cap` (no padding), and only falls
    back to padding for large non-128-multiple extents.  `min_tiles >= 2`
    shrinks the tile so the grid can shard across v7x's two TensorCores when
    there is no other parallel grid axis.
    """
    if length % 128 != 0:
        if length <= cap:
            return length, length  # full-extent tile is always legal
        tile = cap
        return tile, ((length + tile - 1) // tile) * tile
    if length <= 128:
        return length, length
    limit = min(cap, length)
    if min_tiles > 1 and length // limit < min_tiles:
        limit = max(128, (length // min_tiles) // 128 * 128)
    tile = 128
    for cand in range(256, limit + 1, 128):
        if length % cand == 0:
            tile = cand
    return tile, length


def _compiler_params(dimension_semantics):
    return pltpu.CompilerParams(
        dimension_semantics=dimension_semantics,
        vmem_limit_bytes=32 * 1024 * 1024,
    )


@functools.partial(jax.jit, static_argnames=("tl_target",))
def factorized_reduce(x_nchw, conv1_w, conv2_w, *, tl_target=2048):
    """x_nchw: (N, C_in, H, W); conv{1,2}_w: (C_out_k, C_in, 1, 1) (PyTorch layout)."""
    N, C_in, H, W = x_nchw.shape
    assert H % 2 == 0 and W % 2 == 0, "FactorizedReduce assumes even spatial dims"
    assert tl_target % 128 == 0
    C_out1 = conv1_w.shape[0]
    C_out2 = conv2_w.shape[0]
    C_out = C_out1 + C_out2
    Ho, Wo = H // 2, W // 2
    L = Ho * Wo
    dtype = x_nchw.dtype
    itemsize = jnp.dtype(dtype).itemsize

    # Weights cast to activation dtype (documented deviation for bf16 inputs);
    # MXU accumulation stays f32 via preferred_element_type.
    w1 = conv1_w.reshape(C_out1, C_in).astype(dtype)
    w2 = conv2_w.reshape(C_out2, C_in).astype(dtype)

    # Disjoint-row stores need the row split on a sublane boundary
    # (8 rows for f32, 16 for bf16, 32 for int8); otherwise fall back.
    min_sublane = 8 * 4 // itemsize
    if C_out1 % min_sublane == 0:
        kernel = _fr_kernel_split
        w1p, w2p = w1, w2
    else:
        kernel = _fr_kernel_padded
        w1p = jnp.concatenate([w1, jnp.zeros((C_out2, C_in), dtype)], axis=0)
        w2p = jnp.concatenate([jnp.zeros((C_out1, C_in), dtype), w2], axis=0)

    # Strided spatial taps stay in XLA (one fused gather pass) -- see TODO above.
    x1 = x_nchw[:, :, 0::2, 0::2]
    x2 = x_nchw[:, :, 1::2, 1::2]

    # Lane-tile cap from an explicit VMEM budget: double-buffered (x1, x2, out)
    # blocks plus resident weights.
    weight_bytes = (w1p.size + w2p.size) * itemsize
    bytes_per_lane = 2 * (2 * C_in + C_out) * itemsize
    cap = (_VMEM_BUDGET_BYTES - 2 * weight_bytes) // bytes_per_lane
    cap = int(max(128, min(tl_target, cap)) // 128 * 128)

    fold_batch = (L < 256) and (N > 1)

    if fold_batch:
        # Small feature maps: fold batch into the lane dim so the output store
        # is lane-dense (>=128 wide) instead of masked partial stores.
        NL = N * L
        x1 = x1.transpose(1, 0, 2, 3).reshape(C_in, NL)
        x2 = x2.transpose(1, 0, 2, 3).reshape(C_in, NL)
        TL, Lp = _pick_tile(NL, cap, min_tiles=2 if NL >= 1024 else 1)
        if Lp != NL:
            pad = ((0, 0), (0, Lp - NL))
            x1 = jnp.pad(x1, pad)
            x2 = jnp.pad(x2, pad)
        num_l = Lp // TL
        out_flat = pl.pallas_call(
            kernel,
            out_shape=jax.ShapeDtypeStruct((C_out, Lp), dtype),
            grid=(num_l,),
            in_specs=[
                pl.BlockSpec((C_in, TL), lambda l: (0, l)),
                pl.BlockSpec((C_in, TL), lambda l: (0, l)),
                pl.BlockSpec((w1p.shape[0], C_in), lambda l: (0, 0)),  # resident
                pl.BlockSpec((w2p.shape[0], C_in), lambda l: (0, 0)),  # resident
            ],
            out_specs=pl.BlockSpec((C_out, TL), lambda l: (0, l)),
            compiler_params=_compiler_params(("parallel",)),
        )(x1, x2, w1p, w2p)
        out = out_flat[:, :NL] if Lp != NL else out_flat
        return out.reshape(C_out, N, Ho, Wo).transpose(1, 0, 2, 3)

    # Large feature maps: stay in NCHW (no output transpose); grid (batch, L-tiles).
    x1 = x1.reshape(N, C_in, L)
    x2 = x2.reshape(N, C_in, L)
    TL, Lp = _pick_tile(L, cap, min_tiles=2 if (N == 1 and L >= 1024) else 1)
    if Lp != L:
        pad = ((0, 0), (0, 0), (0, Lp - L))
        x1 = jnp.pad(x1, pad)
        x2 = jnp.pad(x2, pad)
    num_l = Lp // TL
    out_flat = pl.pallas_call(
        kernel,
        out_shape=jax.ShapeDtypeStruct((N, C_out, Lp), dtype),
        grid=(N, num_l),
        in_specs=[
            pl.BlockSpec((None, C_in, TL), lambda n, l: (n, 0, l)),
            pl.BlockSpec((None, C_in, TL), lambda n, l: (n, 0, l)),
            pl.BlockSpec((w1p.shape[0], C_in), lambda n, l: (0, 0)),  # resident
            pl.BlockSpec((w2p.shape[0], C_in), lambda n, l: (0, 0)),  # resident
        ],
        out_specs=pl.BlockSpec((None, C_out, TL), lambda n, l: (n, 0, l)),
        compiler_params=_compiler_params(("parallel", "parallel")),
    )(x1, x2, w1p, w2p)
    out = out_flat[:, :, :L] if Lp != L else out_flat
    return out.reshape(N, C_out, Ho, Wo)


def _reference(x, conv1_w, conv2_w):
    """Pure-JAX reference of the PyTorch semantics."""
    C_out1, C_in = conv1_w.shape[0], conv1_w.shape[1]
    w1 = conv1_w.reshape(C_out1, C_in)
    w2 = conv2_w.reshape(conv2_w.shape[0], C_in)
    r1 = jnp.einsum("oc,ncij->noij", w1, x[:, :, 0::2, 0::2])
    r2 = jnp.einsum("oc,ncij->noij", w2, x[:, :, 1::2, 1::2])
    return jnp.concatenate([r1, r2], axis=1)


if __name__ == "__main__":
    key = jax.random.PRNGKey(0)

    # Covers: (1) small-L batch-folded layout + split-store kernel,
    #         (2) large-L NCHW layout + padded-weight fallback (C_out1 % 8 != 0),
    #         (3) N=1 small-L NCHW path + split-store kernel.
    configs = [
        (2, 8, 16, 16, 16),
        (2, 4, 8, 32, 32),
        (1, 8, 16, 16, 16),
    ]
    for idx, (N, C_in, C_out, H, W) in enumerate(configs):
        k_x, k_w1, k_w2, key = jax.random.split(key, 4)
        C_out1 = C_out // 2
        C_out2 = C_out - C_out1
        x = jax.random.normal(k_x, (N, C_in, H, W), dtype=jnp.float32)
        conv1_w = jax.random.normal(k_w1, (C_out1, C_in, 1, 1), jnp.float32) * 0.1
        conv2_w = jax.random.normal(k_w2, (C_out2, C_in, 1, 1), jnp.float32) * 0.1

        out = jax.block_until_ready(factorized_reduce(x, conv1_w, conv2_w))
        ref = _reference(x, conv1_w, conv2_w)
        assert out.shape == (N, C_out, H // 2, W // 2), (idx, out.shape)
        err = float(jnp.max(jnp.abs(out - ref)))
        assert jnp.allclose(out, ref, atol=1e-5, rtol=1e-5), (idx, err)

    print("KERNEL_OK")
</pallas_src>

<mosaic_0001>
module attributes {stable_mosaic.version = 11 : i64} {
  func.func @_fr_kernel_split(%arg0: i32, %arg1: memref<8x128xf32, #tpu.memory_space<vmem>>, %arg2: memref<8x128xf32, #tpu.memory_space<vmem>>, %arg3: memref<8x8xf32, #tpu.memory_space<vmem>>, %arg4: memref<8x8xf32, #tpu.memory_space<vmem>>, %arg5: memref<16x128xf32, #tpu.memory_space<vmem>>) attributes {dimension_semantics = [#tpu.dimension_semantics<parallel>], iteration_bounds = array<i64: 1>, scalar_prefetch = 0 : i64, scratch_operands = 0 : i64, tpu.core_type = #tpu.core_type<tc>, window_params = [{transform_indices = @transform_0, window_bounds = array<i64: 8, 128>}, {transform_indices = @transform_1, window_bounds = array<i64: 8, 128>}, {pipeline_mode = #tpu.pipeline_mode<synchronous>, transform_indices = @transform_2, window_bounds = array<i64: 8, 8>}, {pipeline_mode = #tpu.pipeline_mode<synchronous>, transform_indices = @transform_3, window_bounds = array<i64: 8, 8>}, {transform_indices = @transform_4, window_bounds = array<i64: 16, 128>}]} {
    %c0 = arith.constant 0 : index
    %c0_0 = arith.constant 0 : index
    %0 = vector.load %arg3[%c0, %c0_0] : memref<8x8xf32, #tpu.memory_space<vmem>>, vector<8x8xf32>
    %c0_1 = arith.constant 0 : index
    %c0_2 = arith.constant 0 : index
    %1 = vector.load %arg1[%c0_1, %c0_2] : memref<8x128xf32, #tpu.memory_space<vmem>>, vector<8x128xf32>
    %cst = arith.constant dense<0.000000e+00> : vector<8x128xf32>
    %2 = tpu.matmul %0, %1, %cst {dimension_numbers = #tpu.dot_dimension_numbers<[1], [0], [0], [1], [0, 0, 1, 1], [], []>} : vector<8x8xf32>, vector<8x128xf32>, vector<8x128xf32> -> vector<8x128xf32>
    %c0_3 = arith.constant 0 : index
    %c0_4 = arith.constant 0 : index
    %3 = vector.load %arg5[%c0_3, %c0_4] : memref<16x128xf32, #tpu.memory_space<vmem>>, vector<8x128xf32>
    tpu.vector_store %arg5[%c0_3, %c0_4], %2 {strides = array<i32>} : memref<16x128xf32, #tpu.memory_space<vmem>>, vector<8x128xf32>,
    %c0_5 = arith.constant 0 : index
    %c0_6 = arith.constant 0 : index
    %4 = vector.load %arg4[%c0_5, %c0_6] : memref<8x8xf32, #tpu.memory_space<vmem>>, vector<8x8xf32>
    %c0_7 = arith.constant 0 : index
    %c0_8 = arith.constant 0 : index
    %5 = vector.load %arg2[%c0_7, %c0_8] : memref<8x128xf32, #tpu.memory_space<vmem>>, vector<8x128xf32>
    %cst_9 = arith.constant dense<0.000000e+00> : vector<8x128xf32>
    %6 = tpu.matmul %4, %5, %cst_9 {dimension_numbers = #tpu.dot_dimension_numbers<[1], [0], [0], [1], [0, 0, 1, 1], [], []>} : vector<8x8xf32>, vector<8x128xf32>, vector<8x128xf32> -> vector<8x128xf32>
    %c8 = arith.constant 8 : index
    %c0_10 = arith.constant 0 : index
    %7 = vector.load %arg5[%c8, %c0_10] : memref<16x128xf32, #tpu.memory_space<vmem>>, vector<8x128xf32>
    tpu.vector_store %arg5[%c8, %c0_10], %6 {strides = array<i32>} : memref<16x128xf32, #tpu.memory_space<vmem>>, vector<8x128xf32>,
    return
  }
  func.func @transform_0(%arg0: i32) -> (i32, i32) {
    %c0_i32 = arith.constant 0 : i32
    %c0_i32_0 = arith.constant 0 : i32
    return %c0_i32, %arg0 : i32, i32
  }
  func.func @transform_1(%arg0: i32) -> (i32, i32) {
    %c0_i32 = arith.constant 0 : i32
    %c0_i32_0 = arith.constant 0 : i32
    return %c0_i32, %arg0 : i32, i32
  }
  func.func @transform_2(%arg0: i32) -> (i32, i32) {
    %c0_i32 = arith.constant 0 : i32
    %c0_i32_0 = arith.constant 0 : i32
    %c0_i32_1 = arith.constant 0 : i32
    return %c0_i32, %c0_i32_0 : i32, i32
  }
  func.func @transform_3(%arg0: i32) -> (i32, i32) {
    %c0_i32 = arith.constant 0 : i32
    %c0_i32_0 = arith.constant 0 : i32
    %c0_i32_1 = arith.constant 0 : i32
    return %c0_i32, %c0_i32_0 : i32, i32
  }
  func.func @transform_4(%arg0: i32) -> (i32, i32) {
    %c0_i32 = arith.constant 0 : i32
    %c0_i32_0 = arith.constant 0 : i32
    return %c0_i32, %arg0 : i32, i32
  }
}

</mosaic_0001>

<llo_original>
// kernel: factorized_reduce.1
$region0: #{factorized_reduce.1}
  #allocation0 [shape = 'u32[]', space=smem, size = 0x4, offset = 0x4, fixed_abs, tag = 'smem constant byte address 0x4 - core index']
  #allocation1 [shape = 'u32[72,128]{1,0:T(1,128)}', space=vmem, size = 0x9000, scoped, tag = 'internal scratch']
  %s0 = inlined_call_operand.vmem [shape: f32[8,128], index: 0, kind: input, shape index: {}]
  %s1 = inlined_call_operand.vmem [shape: f32[8,128], index: 1, kind: input, shape index: {}]
  %s2 = inlined_call_operand.vmem [shape: f32[8,8], index: 2, kind: input, shape index: {}]
  %s3 = inlined_call_operand.vmem [shape: f32[8,8], index: 3, kind: input, shape index: {}]
  %s4 = inlined_call_operand.vmem [shape: f32[16,128], index: 4, kind: output, shape index: {}]
  %s5 = sld [smem:[#allocation0]]
  $region26: #{factorized_reduce.1} parent=0
    _
  %s7 = ssub.s32 1, %s5
  %s8 = scalar_select 0, %s7, %s5
  // Predicated region
  $region2: #{factorized_reduce.1} parent=0 // pred_check
    _
  $region3: #{factorized_reduce.1} parent=0 // pred_check_branch
    %10 = sbr.rel (0) target = $region5
  $region4: #{factorized_reduce.1} parent=0 // pred_region
    _
  $region5: #{factorized_reduce.1} parent=0 // pred_fallthru
    _
  // Predicated region
  $region6: #{factorized_reduce.1} parent=0 // pred_check
    _
  $region7: #{factorized_reduce.1} parent=0 // pred_check_branch
    %12 = sbr.rel (0) target = $region9
  $region8: #{factorized_reduce.1} parent=0 // pred_region
    _
  $region9: #{factorized_reduce.1} parent=0 // pred_fallthru
    _
  // Predicated region
  $region10: #{factorized_reduce.1} parent=0 // pred_check
    _
  $region11: #{factorized_reduce.1} parent=0 // pred_check_branch
    %14 = sbr.rel (0) target = $region13
  $region12: #{factorized_reduce.1} parent=0 // pred_region
    _
  $region13: #{factorized_reduce.1} parent=0 // pred_fallthru
    _
  // Predicated region
  $region14: #{factorized_reduce.1} parent=0 // pred_check
    _
  $region15: #{factorized_reduce.1} parent=0 // pred_check_branch
    %16 = sbr.rel (0) target = $region17
  $region16: #{factorized_reduce.1} parent=0 // pred_region
    _
  $region17: #{factorized_reduce.1} parent=0 // pred_fallthru
    _
  %v17 = vld [vmem:[%s2] sm:$0xff]
  %v18 = vld [vmem:[%s0] sm:$0xff]
  %vm19 = vcmask 64512
  %v21 = vsel %vm19, %v17, 0
  %23 = vmatpush.msra.mxu0 0.0
  %24 = vmatpush.msra.mxu0 0.0
  %25 = vmatpush.msra.mxu0 0.0
  %26 = vmatpush.msra.mxu0 0.0
  %27 = vmatpush.msra.mxu0 0.0
  %28 = vmatpush.msra.mxu0 0.0
  %29 = vmatpush.msra.mxu0 0.0
  %30 = vmatpush.msra.mxu0 0.0
  %31 = vmatpush.msra.mxu0 0.0
  %32 = vmatpush.msra.mxu0 0.0
  %33 = vmatpush.msra.mxu0 0.0
  %34 = vmatpush.msra.mxu0 0.0
  %35 = vmatpush.msra.mxu0 0.0
  %36 = vmatpush.msra.mxu0 0.0
  %37 = vmatpush.msra.mxu0 0.0
  %38 = vmatpush.msra.mxu0 %v18
  %39 = vmatmul.f32.gmra.mxu0 %v21
  %v40 = vpop.f32.mrf.mxu0
  %v41 = vadd.f32 0.0, %v40
  %42 = vdwg.mxu0
  %43 = vst [vmem:[%s4] sm:$0xff] %v41
  %v44 = vld [vmem:[%s3] sm:$0xff]
  %v45 = vld [vmem:[%s1] sm:$0xff]
  %v47 = vsel %vm19, %v44, 0
  %49 = vmatpush.msra.mxu0 0.0
  %50 = vmatpush.msra.mxu0 0.0
  %51 = vmatpush.msra.mxu0 0.0
  %52 = vmatpush.msra.mxu0 0.0
  %53 = vmatpush.msra.mxu0 0.0
  %54 = vmatpush.msra.mxu0 0.0
  %55 = vmatpush.msra.mxu0 0.0
  %56 = vmatpush.msra.mxu0 0.0
  %57 = vmatpush.msra.mxu0 0.0
  %58 = vmatpush.msra.mxu0 0.0
  %59 = vmatpush.msra.mxu0 0.0
  %60 = vmatpush.msra.mxu0 0.0
  %61 = vmatpush.msra.mxu0 0.0
  %62 = vmatpush.msra.mxu0 0.0
  %63 = vmatpush.msra.mxu0 0.0
  %64 = vmatpush.msra.mxu0 %v45
  %65 = vmatmul.f32.gmra.mxu0 %v47
  %v66 = vpop.f32.mrf.mxu0
  %v67 = vadd.f32 0.0, %v66
  %68 = vdwg.mxu0
  %69 = vst [vmem:[%s4 + $0x8] sm:$0xff] %v67
  // Predicated region
  $region18: #{factorized_reduce.1} parent=0 // pred_check
    _
  $region19: #{factorized_reduce.1} parent=0 // pred_check_branch
    %71 = sbr.rel (0) target = $region21
  $region20: #{factorized_reduce.1} parent=0 // pred_region
    _
  $region21: #{factorized_reduce.1} parent=0 // pred_fallthru
    _
  // Predicated region
  $region22: #{factorized_reduce.1} parent=0 // pred_check
    _
  $region23: #{factorized_reduce.1} parent=0 // pred_check_branch
    %73 = sbr.rel (0) target = $region25
  $region24: #{factorized_reduce.1} parent=0 // pred_region
    _
  $region25: #{factorized_reduce.1} parent=0 // pred_fallthru
    _

</llo_original>
